<compile_context>
chip_gen: v5e
topology: v5e:2x2
jax: 0.10.0
libtpu: 0.0.40
codegen_flags: <defaults>
</compile_context>

<pallas_src>
import jax
import jax.numpy as jnp
from jax import lax
from jax.experimental import pallas as pl
from jax.experimental.pallas import tpu as pltpu

N, C_IN, H, W = 2, 195, 17, 20
KH, KW = 3, 3
WP = W + 2                      # zero-padded row width (padding=1 each side) = 22
HP = H + 3                      # H padded by (1, 2) rows                      = 20
FLAT_PAD = HP * WP              # 440: flattened padded pixels per batch
C_PAD = 200                     # 195 -> 200: sublane-clean MXU contraction dim
OUT_PAD = 384                   # 3 * 128 lanes: unmasked output stores
OUT_FLAT = H * WP               # 374 real output slab (2 junk cols per row)
assert OUT_PAD + (KH - 1) * WP + (KW - 1) <= FLAT_PAD   # every tap slice in range


def conv_t_kernel(x_ref, w_ref, o_ref):
    # x_ref: (N, C_PAD, FLAT_PAD)  zero-padded images, channels x flat padded pixels
    # w_ref: (KH*KW, C_PAD)        row t = 3*kh+kw holds Wf[kh, kw, :] (zero-padded)
    # o_ref: (N, OUT_PAD)          lane-dense output slab, one sublane row per batch
    w = w_ref[...]
    rows = []
    for b in range(N):                                   # static unroll, single program
        # One MXU matmul per batch: (9, 200) @ (200, 440) -> (9, 440), f32 acc.
        y = jnp.dot(w, x_ref[b], preferred_element_type=jnp.float32)
        acc = jnp.zeros((1, OUT_PAD), jnp.float32)
        for kh in range(KH):                             # 9 lane-shifted adds
            for kw in range(KW):
                t = kh * KW + kw
                off = kh * WP + kw
                acc = acc + y[t:t + 1, off:off + OUT_PAD]
        rows.append(acc)
    acc_all = jnp.concatenate(rows, axis=0)              # (N, OUT_PAD)
    # v2 = v1 > 0 ; v3 = v1 * -93.0 ; v4 = where(v2, v1, v3)
    o_ref[...] = jnp.where(acc_all > 0, acc_all, acc_all * -93.0)


@jax.jit
def model_forward(x_nchw, w_torch):
    """x_nchw: (N, 195, H, W) f32; w_torch: (195, 1, 3, 3) f32 (ConvTranspose2d weight).

    Returns (N, 1, H, W) f32, matching the PyTorch module.
    """
    n, c, h, w = x_nchw.shape
    assert (n, c, h, w) == (N, C_IN, H, W)

    # --- glue: ONE pad (channels + spatial) and a bitcast reshape.  With
    # allow_input_fusion this is fused into the pallas_call operand rather
    # than doing an HBM round trip through a separate XLA fusion.
    x_pad = jnp.pad(x_nchw, ((0, 0), (0, C_PAD - C_IN), (1, 2), (1, 1)))  # (N,200,20,22)
    x_in = x_pad.reshape(n, C_PAD, FLAT_PAD)                              # (N,200,440)

    # Wf[t=3*kh+kw, c] = W[c, 0, 2-kh, 2-kw]  (spatial flip + in/out channel swap)
    wt = w_torch[:, 0, ::-1, ::-1].reshape(C_IN, KH * KW).T               # (9, 195)
    wt = jnp.pad(wt, ((0, 0), (0, C_PAD - C_IN)))                         # (9, 200)

    flops = 2 * n * KH * KW * C_PAD * FLAT_PAD
    bytes_accessed = (x_in.size + wt.size + n * OUT_PAD) * 4

    out = pl.pallas_call(
        conv_t_kernel,
        out_shape=jax.ShapeDtypeStruct((n, OUT_PAD), jnp.float32),
        grid_spec=pltpu.PrefetchScalarGridSpec(
            num_scalar_prefetch=0,
            grid=(1,),                                   # single program, one DMA/operand
            in_specs=[
                pl.BlockSpec((N, C_PAD, FLAT_PAD), lambda i: (0, 0, 0)),
                pl.BlockSpec((KH * KW, C_PAD), lambda i: (0, 0)),
            ],
            out_specs=pl.BlockSpec((N, OUT_PAD), lambda i: (0, 0)),
        ),
        compiler_params=pltpu.CompilerParams(
            dimension_semantics=("arbitrary",),
            allow_input_fusion=[True, True],
        ),
        cost_estimate=pl.CostEstimate(
            flops=flops, transcendentals=0, bytes_accessed=bytes_accessed),
    )(x_in, wt)

    # (N, 384) -> keep the first 374 = 17*22 columns -> (N, 17, 22) -> drop junk cols.
    out = out[:, :OUT_FLAT].reshape(n, H, WP)[:, :, :W]
    return out[:, None, :, :]


def _reference(x_nchw, w_torch):
    """Independent check via XLA conv: conv_transpose(stride=1, pad=1) ==
    correlation with the flipped / channel-swapped kernel."""
    rhs = jnp.transpose(w_torch[:, :, ::-1, ::-1], (1, 0, 2, 3))   # (1, 195, 3, 3)
    y = lax.conv_general_dilated(
        x_nchw, rhs, window_strides=(1, 1), padding=((1, 1), (1, 1)),
        dimension_numbers=("NCHW", "OIHW", "NCHW"))
    return jnp.where(y > 0, y, y * -93.0)


if __name__ == "__main__":
    key = jax.random.PRNGKey(0)
    kx, kw = jax.random.split(key)
    x4 = jax.random.normal(kx, (N, C_IN, H, W), dtype=jnp.float32)
    # ConvTranspose2d weight shape: (in_channels=195, out_channels=1, 3, 3)
    fan_in = C_IN * KH * KW
    bound = 1.0 / (fan_in ** 0.5)
    wgt = jax.random.uniform(kw, (C_IN, 1, KH, KW), jnp.float32, -bound, bound)

    out = model_forward(x4, wgt)
    out = jax.block_until_ready(out)

    ref = _reference(x4, wgt)
    assert out.shape == (N, 1, H, W)
    assert jnp.allclose(out, ref, rtol=1e-3, atol=2e-3)
    print("KERNEL_OK")
</pallas_src>

<mosaic_0001>
module attributes {stable_mosaic.version = 11 : i64} {
  func.func @conv_t_kernel(%arg0: i32, %arg1: memref<2x200x440xf32, #tpu.memory_space<vmem>>, %arg2: memref<9x200xf32, #tpu.memory_space<vmem>>, %arg3: memref<2x384xf32, #tpu.memory_space<vmem>>) attributes {dimension_semantics = [#tpu.dimension_semantics<arbitrary>], iteration_bounds = array<i64: 1>, scalar_prefetch = 0 : i64, scratch_operands = 0 : i64, tpu.core_type = #tpu.core_type<tc>, window_params = [{pipeline_mode = #tpu.pipeline_mode<synchronous>, transform_indices = @transform_0, window_bounds = array<i64: 2, 200, 440>}, {pipeline_mode = #tpu.pipeline_mode<synchronous>, transform_indices = @transform_1, window_bounds = array<i64: 9, 200>}, {pipeline_mode = #tpu.pipeline_mode<synchronous>, transform_indices = @transform_2, window_bounds = array<i64: 2, 384>}]} {
    %c0 = arith.constant 0 : index
    %c0_0 = arith.constant 0 : index
    %0 = vector.load %arg2[%c0, %c0_0] : memref<9x200xf32, #tpu.memory_space<vmem>>, vector<9x200xf32>
    %c0_1 = arith.constant 0 : index
    %c0_2 = arith.constant 0 : index
    %c0_3 = arith.constant 0 : index
    %1 = vector.load %arg1[%c0_1, %c0_2, %c0_3] : memref<2x200x440xf32, #tpu.memory_space<vmem>>, vector<1x200x440xf32>
    %2 = vector.shape_cast %1 : vector<1x200x440xf32> to vector<200x440xf32>
    %cst = arith.constant dense<0.000000e+00> : vector<9x440xf32>
    %3 = tpu.matmul %0, %2, %cst {dimension_numbers = #tpu.dot_dimension_numbers<[1], [0], [0], [1], [0, 0, 1, 1], [], []>} : vector<9x200xf32>, vector<200x440xf32>, vector<9x440xf32> -> vector<9x440xf32>
    %cst_4 = arith.constant 0.000000e+00 : f32
    %4 = vector.broadcast %cst_4 : f32 to vector<1x384xf32>
    %5 = vector.extract_strided_slice %3 {offsets = [0, 0], sizes = [1, 384], strides = [1, 1]} : vector<9x440xf32> to vector<1x384xf32>
    %6 = arith.addf %4, %5 : vector<1x384xf32>
    %7 = vector.extract_strided_slice %3 {offsets = [1, 1], sizes = [1, 384], strides = [1, 1]} : vector<9x440xf32> to vector<1x384xf32>
    %8 = arith.addf %6, %7 : vector<1x384xf32>
    %9 = vector.extract_strided_slice %3 {offsets = [2, 2], sizes = [1, 384], strides = [1, 1]} : vector<9x440xf32> to vector<1x384xf32>
    %10 = arith.addf %8, %9 : vector<1x384xf32>
    %11 = vector.extract_strided_slice %3 {offsets = [3, 22], sizes = [1, 384], strides = [1, 1]} : vector<9x440xf32> to vector<1x384xf32>
    %12 = arith.addf %10, %11 : vector<1x384xf32>
    %13 = vector.extract_strided_slice %3 {offsets = [4, 23], sizes = [1, 384], strides = [1, 1]} : vector<9x440xf32> to vector<1x384xf32>
    %14 = arith.addf %12, %13 : vector<1x384xf32>
    %15 = vector.extract_strided_slice %3 {offsets = [5, 24], sizes = [1, 384], strides = [1, 1]} : vector<9x440xf32> to vector<1x384xf32>
    %16 = arith.addf %14, %15 : vector<1x384xf32>
    %17 = vector.extract_strided_slice %3 {offsets = [6, 44], sizes = [1, 384], strides = [1, 1]} : vector<9x440xf32> to vector<1x384xf32>
    %18 = arith.addf %16, %17 : vector<1x384xf32>
    %19 = vector.extract_strided_slice %3 {offsets = [7, 45], sizes = [1, 384], strides = [1, 1]} : vector<9x440xf32> to vector<1x384xf32>
    %20 = arith.addf %18, %19 : vector<1x384xf32>
    %21 = vector.extract_strided_slice %3 {offsets = [8, 46], sizes = [1, 384], strides = [1, 1]} : vector<9x440xf32> to vector<1x384xf32>
    %22 = arith.addf %20, %21 : vector<1x384xf32>
    %c1 = arith.constant 1 : index
    %c0_5 = arith.constant 0 : index
    %c0_6 = arith.constant 0 : index
    %23 = vector.load %arg1[%c1, %c0_5, %c0_6] : memref<2x200x440xf32, #tpu.memory_space<vmem>>, vector<1x200x440xf32>
    %24 = vector.shape_cast %23 : vector<1x200x440xf32> to vector<200x440xf32>
    %cst_7 = arith.constant dense<0.000000e+00> : vector<9x440xf32>
    %25 = tpu.matmul %0, %24, %cst_7 {dimension_numbers = #tpu.dot_dimension_numbers<[1], [0], [0], [1], [0, 0, 1, 1], [], []>} : vector<9x200xf32>, vector<200x440xf32>, vector<9x440xf32> -> vector<9x440xf32>
    %cst_8 = arith.constant 0.000000e+00 : f32
    %26 = vector.broadcast %cst_8 : f32 to vector<1x384xf32>
    %27 = vector.extract_strided_slice %25 {offsets = [0, 0], sizes = [1, 384], strides = [1, 1]} : vector<9x440xf32> to vector<1x384xf32>
    %28 = arith.addf %26, %27 : vector<1x384xf32>
    %29 = vector.extract_strided_slice %25 {offsets = [1, 1], sizes = [1, 384], strides = [1, 1]} : vector<9x440xf32> to vector<1x384xf32>
    %30 = arith.addf %28, %29 : vector<1x384xf32>
    %31 = vector.extract_strided_slice %25 {offsets = [2, 2], sizes = [1, 384], strides = [1, 1]} : vector<9x440xf32> to vector<1x384xf32>
    %32 = arith.addf %30, %31 : vector<1x384xf32>
    %33 = vector.extract_strided_slice %25 {offsets = [3, 22], sizes = [1, 384], strides = [1, 1]} : vector<9x440xf32> to vector<1x384xf32>
    %34 = arith.addf %32, %33 : vector<1x384xf32>
    %35 = vector.extract_strided_slice %25 {offsets = [4, 23], sizes = [1, 384], strides = [1, 1]} : vector<9x440xf32> to vector<1x384xf32>
    %36 = arith.addf %34, %35 : vector<1x384xf32>
    %37 = vector.extract_strided_slice %25 {offsets = [5, 24], sizes = [1, 384], strides = [1, 1]} : vector<9x440xf32> to vector<1x384xf32>
    %38 = arith.addf %36, %37 : vector<1x384xf32>
    %39 = vector.extract_strided_slice %25 {offsets = [6, 44], sizes = [1, 384], strides = [1, 1]} : vector<9x440xf32> to vector<1x384xf32>
    %40 = arith.addf %38, %39 : vector<1x384xf32>
    %41 = vector.extract_strided_slice %25 {offsets = [7, 45], sizes = [1, 384], strides = [1, 1]} : vector<9x440xf32> to vector<1x384xf32>
    %42 = arith.addf %40, %41 : vector<1x384xf32>
    %43 = vector.extract_strided_slice %25 {offsets = [8, 46], sizes = [1, 384], strides = [1, 1]} : vector<9x440xf32> to vector<1x384xf32>
    %44 = arith.addf %42, %43 : vector<1x384xf32>
    %45 = tpu.concatenate %22, %44 in 0 : vector<1x384xf32>, vector<1x384xf32> -> vector<2x384xf32>
    %cst_9 = arith.constant 0.000000e+00 : f32
    %46 = vector.broadcast %cst_9 : f32 to vector<2x384xf32>
    %47 = arith.cmpf ogt, %45, %46 : vector<2x384xf32>
    %cst_10 = arith.constant -9.300000e+01 : f32
    %48 = vector.broadcast %cst_10 : f32 to vector<2x384xf32>
    %49 = arith.mulf %45, %48 : vector<2x384xf32>
    %50 = arith.select %47, %45, %49 : vector<2x384xi1>, vector<2x384xf32>
    %c0_11 = arith.constant 0 : index
    %c0_12 = arith.constant 0 : index
    %51 = vector.load %arg3[%c0_11, %c0_12] : memref<2x384xf32, #tpu.memory_space<vmem>>, vector<2x384xf32>
    tpu.vector_store %arg3[%c0_11, %c0_12], %50 {strides = array<i32>} : memref<2x384xf32, #tpu.memory_space<vmem>>, vector<2x384xf32>,
    return
  }
  func.func @transform_0(%arg0: i32) -> (i32, i32, i32) {
    %c0_i32 = arith.constant 0 : i32
    %c0_i32_0 = arith.constant 0 : i32
    %c0_i32_1 = arith.constant 0 : i32
    %c0_i32_2 = arith.constant 0 : i32
    return %c0_i32, %c0_i32_0, %c0_i32_1 : i32, i32, i32
  }
  func.func @transform_1(%arg0: i32) -> (i32, i32) {
    %c0_i32 = arith.constant 0 : i32
    %c0_i32_0 = arith.constant 0 : i32
    %c0_i32_1 = arith.constant 0 : i32
    return %c0_i32, %c0_i32_0 : i32, i32
  }
  func.func @transform_2(%arg0: i32) -> (i32, i32) {
    %c0_i32 = arith.constant 0 : i32
    %c0_i32_0 = arith.constant 0 : i32
    %c0_i32_1 = arith.constant 0 : i32
    return %c0_i32, %c0_i32_0 : i32, i32
  }
}

</mosaic_0001>

<llo_original>
// kernel: squeeze.1
$region0: #{squeeze.1}
  %s0 = inlined_call_operand.vmem [shape: f32[195,3,3], index: 0, kind: input, shape index: {}]
  %s1 = inlined_call_operand.vmem [shape: f32[195,9], index: 1, kind: output, shape index: {}]
  $region1: #{squeeze.1} parent=0
    #allocation0 [shape = 'u8[24576]{0}', space=vmem, size = 0x6000, scoped, tag = 'scoped mem for input reshape']
    %s3 = ssub.s32 16, 1
    %s4 = scalar_lea.vmem %s0, 20
    %v5 = vld [vmem:[%s4] sm:%s3]
    %s6 = scalar_lea.vmem [#allocation0], 40
    %7 = vst [vmem:[%s6] sm:%s3] %v5
    %s8 = scalar_lea.vmem %s0, 16
    %v9 = vld [vmem:[%s8] sm:%s3]
    %s10 = scalar_lea.vmem [#allocation0], 32
    %11 = vst [vmem:[%s10] sm:%s3] %v9
    %s12 = scalar_lea.vmem %s0, 12
    %v13 = vld [vmem:[%s12] sm:%s3]
    %s14 = scalar_lea.vmem [#allocation0], 24
    %15 = vst [vmem:[%s14] sm:%s3] %v13
    %s16 = scalar_lea.vmem %s0, 8
    %v17 = vld [vmem:[%s16] sm:%s3]
    %s18 = scalar_lea.vmem [#allocation0], 16
    %19 = vst [vmem:[%s18] sm:%s3] %v17
    %s20 = scalar_lea.vmem %s0, 4
    %v21 = vld [vmem:[%s20] sm:%s3]
    %s22 = scalar_lea.vmem [#allocation0], 8
    %23 = vst [vmem:[%s22] sm:%s3] %v21
    %v24 = vld [vmem:[%s0] sm:%s3]
    %25 = vst [vmem:[#allocation0] sm:%s3] %v24
    %s26 = scalar_lea.vmem [#allocation0], 8
    %v27 = vld [vmem:[%s26] sm:$0x7]
    %vm28 = vcmask 547840
    %s29 = scalar_lea.vmem %s1, 8
    %30 = vst.msk [vmem:[%s29] sm:$0x7] %vm28, %v27
    %s31 = scalar_lea.vmem [#allocation0], 24
    %v32 = vld [vmem:[%s31] sm:$0x7]
    %vm33 = vcmask 547840
    %s34 = scalar_lea.vmem %s1, 11
    %35 = vst.msk [vmem:[%s34] sm:$0x7] %vm33, %v32
    %s36 = scalar_lea.vmem [#allocation0], 40
    %v37 = vld [vmem:[%s36] sm:$0x7]
    %vm38 = vcmask 547840
    %s39 = scalar_lea.vmem %s1, 14
    %40 = vst.msk [vmem:[%s39] sm:$0x3] %vm38, %v37
    %s41 = scalar_lea.vmem %s1, 22
    %42 = vst.msk [vmem:[%s41] sm:$0x4] %vm38, %v37
    %v43 = vld [vmem:[#allocation0] sm:$0x7]
    %44 = vst [vmem:[%s1] sm:$0x7] %v43
    %s45 = scalar_lea.vmem [#allocation0], 16
    %v46 = vld [vmem:[%s45] sm:$0x7]
    %s47 = scalar_lea.vmem %s1, 3
    %48 = vst [vmem:[%s47] sm:$0x7] %v46
    %s49 = scalar_lea.vmem [#allocation0], 32
    %v50 = vld [vmem:[%s49] sm:$0x7]
    %s51 = scalar_lea.vmem %s1, 6
    %52 = vst [vmem:[%s51] sm:$0x3] %v50
    %s53 = scalar_lea.vmem %s1, 14
    %54 = vst [vmem:[%s53] sm:$0x4] %v50

// kernel: model_forward.2
$region0: #{model_forward.2}
  #allocation0 [shape = 'u32[]', space=smem, size = 0x4, offset = 0x4, fixed_abs, tag = 'smem constant byte address 0x4 - core index']
  #allocation1 [shape = 'u32[72,128]{1,0:T(1,128)}', space=vmem, size = 0x9000, scoped, tag = 'internal scratch']
  #allocation2 [shape = 'u32[2048]{0}', space=vmem, size = 0x2000, scoped, tag = 'scoped memory for model_forward.2']
  #allocation3 [shape = 'u32[2048]{0}', space=vmem, size = 0x2000, scoped, tag = 'scoped memory for model_forward.2']
  #allocation4 [shape = 'u32[2048]{0}', space=vmem, size = 0x2000, scoped, tag = 'scoped memory for model_forward.2']
  #allocation5 [shape = 'u32[2048]{0}', space=vmem, size = 0x2000, scoped, tag = 'scoped memory for model_forward.2']
  #allocation6 [shape = 'u32[2048]{0}', space=vmem, size = 0x2000, scoped, tag = 'scoped memory for model_forward.2']
  %s0 = inlined_call_operand.vmem [shape: f32[2,200,440], index: 0, kind: input, shape index: {}]
  %s1 = inlined_call_operand.vmem [shape: f32[9,195], index: 1, kind: input, shape index: {}]
  %s2 = inlined_call_operand.<no memory space> [shape: f32[], index: 2, kind: input, shape index: {}]
  %s3 = inlined_call_operand.vmem [shape: f32[2,384], index: 3, kind: output, shape index: {}]
  %s4 = sld [smem:[#allocation0]]
  $region18: #{model_forward.2} parent=0
    _
  %s6 = ssub.s32 1, %s4
  %s7 = scalar_select 0, %s6, %s4
  %v8 = vstv %s2
  $region1: #{model_forward.2} parent=0
    #allocation7 [shape = 'u8[16384]{0}', space=vmem, size = 0x4000, dematerialized = true, scoped, tag = 'FusionAdapter Buffer %fusion.1 = f32[9,200]{1,0:T(8,128)} fusion(%param_1.1, %param_2), kind=kLoop, calls=%fused_computation.2.clone, metadata={op_name="jit(model_forward)/jit(_pad)/pad" stack_frame_id=10}']
    // Predicated region
    $region2: #{model_forward.2} parent=1 // pred_check
      _
    $region3: #{model_forward.2} parent=1 // pred_check_branch
      %10 = sbr.rel (0) target = $region5
    $region4: #{model_forward.2} parent=1 // pred_region
      _
    $region5: #{model_forward.2} parent=1 // pred_fallthru
      _
    // Predicated region
    $region6: #{model_forward.2} parent=1 // pred_check
      _
    $region7: #{model_forward.2} parent=1 // pred_check_branch
      %12 = sbr.rel (0) target = $region9
    $region8: #{model_forward.2} parent=1 // pred_region
      _
    $region9: #{model_forward.2} parent=1 // pred_fallthru
      _
    %v13 = vld [vmem:[%s1] sm:$0xff]
    %v14 = vlaneseq
    %v15 = vshrl.u32 %v14, 7
    %vm17 = vcmp.lt.s32.totalorder %v15, 9
    %v18 = vsel %vm17, %v13, %v8
    %v19 = vlaneseq
    %v20 = vand.u32 %v19, 127
    %vm22 = vcmp.lt.s32.totalorder %v20, 195
    %v23 = vsel %vm22, %v18, %v8
    %s25 = ssub.s32 256, 1
    %26 = vst [vmem:[#allocation7] sm:%s25] %v23
    %s27 = scalar_lea.vmem %s1, 8
    %v28 = vld [vmem:[%s27] sm:$0xff]
    %v29 = vlaneseq
    %v30 = vshrl.u32 %v29, 7
    %vm32 = vcmp.lt.s32.totalorder %v30, 9
    %v33 = vsel %vm32, %v28, %v8
    %v34 = vlaneseq
    %v35 = vand.u32 %v34, 127
    %v36 = vadd.s32 %v35, 128
    %vm37 = vcmp.lt.s32.totalorder %v36, 195
    %v38 = vsel %vm37, %v33, %v8
    %s39 = scalar_lea.vmem [#allocation7], 8
    %s41 = ssub.s32 256, 1
    %42 = vst [vmem:[%s39] sm:%s41] %v38
    %s43 = scalar_lea.vmem %s1, 16
    %v44 = vld [vmem:[%s43] sm:$0xff]
    %v45 = vlaneseq
    %v46 = vshrl.u32 %v45, 7
    %v47 = vadd.s32 %v46, 8
    %vm48 = vcmp.lt.s32.totalorder %v47, 9
    %v49 = vsel %vm48, %v44, %v8
    %v50 = vlaneseq
    %v51 = vand.u32 %v50, 127
    %vm53 = vcmp.lt.s32.totalorder %v51, 195
    %v54 = vsel %vm53, %v49, %v8
    %s55 = scalar_lea.vmem [#allocation7], 16
    %s57 = ssub.s32 256, 1
    %58 = vst [vmem:[%s55] sm:%s57] %v54
    %s59 = scalar_lea.vmem %s1, 24
    %v60 = vld [vmem:[%s59] sm:$0xff]
    %v61 = vlaneseq
    %v62 = vshrl.u32 %v61, 7
    %v63 = vadd.s32 %v62, 8
    %vm64 = vcmp.lt.s32.totalorder %v63, 9
    %v65 = vsel %vm64, %v60, %v8
    %v66 = vlaneseq
    %v67 = vand.u32 %v66, 127
    %v68 = vadd.s32 %v67, 128
    %vm69 = vcmp.lt.s32.totalorder %v68, 195
    %v70 = vsel %vm69, %v65, %v8
    %s71 = scalar_lea.vmem [#allocation7], 24
    %s73 = ssub.s32 256, 1
    %74 = vst [vmem:[%s71] sm:%s73] %v70
    %v75 = vld [vmem:[#allocation7] sm:$0xff]
    %v76 = vld [vmem:[#allocation7 + $0x8] sm:$0xff]
    %v77 = vld [vmem:[#allocation7 + $0x10] sm:$0x1]
    %v78 = vld [vmem:[#allocation7 + $0x18] sm:$0x1]
    %v79 = vld [vmem:[%s0] sm:$0xff]
    %v80 = vld [vmem:[%s0 + $0x8] sm:$0xff]
    %v81 = vld [vmem:[%s0 + $0x10] sm:$0xff]
    %v82 = vld [vmem:[%s0 + $0x18] sm:$0xff]
    %v83 = vld [vmem:[%s0 + $0x20] sm:$0xff]
    %v84 = vld [vmem:[%s0 + $0x28] sm:$0xff]
    %v85 = vld [vmem:[%s0 + $0x30] sm:$0xff]
    %v86 = vld [vmem:[%s0 + $0x38] sm:$0xff]
    %v87 = vld [vmem:[%s0 + $0x40] sm:$0xff]
    %v88 = vld [vmem:[%s0 + $0x48] sm:$0xff]
    %v89 = vld [vmem:[%s0 + $0x50] sm:$0xff]
    %v90 = vld [vmem:[%s0 + $0x58] sm:$0xff]
    %v91 = vld [vmem:[%s0 + $0x60] sm:$0xff]
    %v92 = vld [vmem:[%s0 + $0x68] sm:$0xff]
    %v93 = vld [vmem:[%s0 + $0x70] sm:$0xff]
    %v94 = vld [vmem:[%s0 + $0x78] sm:$0xff]
    %v95 = vld [vmem:[%s0 + $0x80] sm:$0xff]
    %v96 = vld [vmem:[%s0 + $0x88] sm:$0xff]
    %v97 = vld [vmem:[%s0 + $0x90] sm:$0xff]
    %v98 = vld [vmem:[%s0 + $0x98] sm:$0xff]
    %v99 = vld [vmem:[%s0 + $0xa0] sm:$0xff]
    %v100 = vld [vmem:[%s0 + $0xa8] sm:$0xff]
    %v101 = vld [vmem:[%s0 + $0xb0] sm:$0xff]
    %v102 = vld [vmem:[%s0 + $0xb8] sm:$0xff]
    %v103 = vld [vmem:[%s0 + $0xc0] sm:$0xff]
    %v104 = vld [vmem:[%s0 + $0xc8] sm:$0xff]
    %v105 = vld [vmem:[%s0 + $0xd0] sm:$0xff]
    %v106 = vld [vmem:[%s0 + $0xd8] sm:$0xff]
    %v107 = vld [vmem:[%s0 + $0xe0] sm:$0xff]
    %v108 = vld [vmem:[%s0 + $0xe8] sm:$0xff]
    %v109 = vld [vmem:[%s0 + $0xf0] sm:$0xff]
    %v110 = vld [vmem:[%s0 + $0xf8] sm:$0xff]
    %v111 = vld [vmem:[%s0 + $0x100] sm:$0xff]
    %v112 = vld [vmem:[%s0 + $0x108] sm:$0xff]
    %v113 = vld [vmem:[%s0 + $0x110] sm:$0xff]
    %v114 = vld [vmem:[%s0 + $0x118] sm:$0xff]
    %v115 = vld [vmem:[%s0 + $0x120] sm:$0xff]
    %v116 = vld [vmem:[%s0 + $0x128] sm:$0xff]
    %v117 = vld [vmem:[%s0 + $0x130] sm:$0xff]
    %v118 = vld [vmem:[%s0 + $0x138] sm:$0xff]
    %v119 = vld [vmem:[%s0 + $0x140] sm:$0xff]
    %v120 = vld [vmem:[%s0 + $0x148] sm:$0xff]
    %v121 = vld [vmem:[%s0 + $0x150] sm:$0xff]
    %v122 = vld [vmem:[%s0 + $0x158] sm:$0xff]
    %v123 = vld [vmem:[%s0 + $0x160] sm:$0xff]
    %v124 = vld [vmem:[%s0 + $0x168] sm:$0xff]
    %v125 = vld [vmem:[%s0 + $0x170] sm:$0xff]
    %v126 = vld [vmem:[%s0 + $0x178] sm:$0xff]
    %v127 = vld [vmem:[%s0 + $0x180] sm:$0xff]
    %v128 = vld [vmem:[%s0 + $0x188] sm:$0xff]
    %v129 = vld [vmem:[%s0 + $0x190] sm:$0xff]
    %v130 = vld [vmem:[%s0 + $0x198] sm:$0xff]
    %v131 = vld [vmem:[%s0 + $0x1a0] sm:$0xff]
    %v132 = vld [vmem:[%s0 + $0x1a8] sm:$0xff]
    %v133 = vld [vmem:[%s0 + $0x1b0] sm:$0xff]
    %v134 = vld [vmem:[%s0 + $0x1b8] sm:$0xff]
    %v135 = vld [vmem:[%s0 + $0x1c0] sm:$0xff]
    %v136 = vld [vmem:[%s0 + $0x1c8] sm:$0xff]
    %v137 = vld [vmem:[%s0 + $0x1d0] sm:$0xff]
    %v138 = vld [vmem:[%s0 + $0x1d8] sm:$0xff]
    %v139 = vld [vmem:[%s0 + $0x1e0] sm:$0xff]
    %v140 = vld [vmem:[%s0 + $0x1e8] sm:$0xff]
    %v141 = vld [vmem:[%s0 + $0x1f0] sm:$0xff]
    %v142 = vld [vmem:[%s0 + $0x1f8] sm:$0xff]
    %v143 = vld [vmem:[%s0 + $0x200] sm:$0xff]
    %v144 = vld [vmem:[%s0 + $0x208] sm:$0xff]
    %v145 = vld [vmem:[%s0 + $0x210] sm:$0xff]
    %v146 = vld [vmem:[%s0 + $0x218] sm:$0xff]
    %v147 = vld [vmem:[%s0 + $0x220] sm:$0xff]
    %v148 = vld [vmem:[%s0 + $0x228] sm:$0xff]
    %v149 = vld [vmem:[%s0 + $0x230] sm:$0xff]
    %v150 = vld [vmem:[%s0 + $0x238] sm:$0xff]
    %v151 = vld [vmem:[%s0 + $0x240] sm:$0xff]
    %v152 = vld [vmem:[%s0 + $0x248] sm:$0xff]
    %v153 = vld [vmem:[%s0 + $0x250] sm:$0xff]
    %v154 = vld [vmem:[%s0 + $0x258] sm:$0xff]
    %v155 = vld [vmem:[%s0 + $0x260] sm:$0xff]
    %v156 = vld [vmem:[%s0 + $0x268] sm:$0xff]
    %v157 = vld [vmem:[%s0 + $0x270] sm:$0xff]
    %v158 = vld [vmem:[%s0 + $0x278] sm:$0xff]
    %v159 = vld [vmem:[%s0 + $0x280] sm:$0xff]
    %v160 = vld [vmem:[%s0 + $0x288] sm:$0xff]
    %v161 = vld [vmem:[%s0 + $0x290] sm:$0xff]
    %v162 = vld [vmem:[%s0 + $0x298] sm:$0xff]
    %v163 = vld [vmem:[%s0 + $0x2a0] sm:$0xff]
    %v164 = vld [vmem:[%s0 + $0x2a8] sm:$0xff]
    %v165 = vld [vmem:[%s0 + $0x2b0] sm:$0xff]
    %v166 = vld [vmem:[%s0 + $0x2b8] sm:$0xff]
    %v167 = vld [vmem:[%s0 + $0x2c0] sm:$0xff]
    %v168 = vld [vmem:[%s0 + $0x2c8] sm:$0xff]
    %v169 = vld [vmem:[%s0 + $0x2d0] sm:$0xff]
    %v170 = vld [vmem:[%s0 + $0x2d8] sm:$0xff]
    %v171 = vld [vmem:[%s0 + $0x2e0] sm:$0xff]
    %v172 = vld [vmem:[%s0 + $0x2e8] sm:$0xff]
    %v173 = vld [vmem:[%s0 + $0x2f0] sm:$0xff]
    %v174 = vld [vmem:[%s0 + $0x2f8] sm:$0xff]
    %v175 = vld [vmem:[%s0 + $0x300] sm:$0xff]
    %v176 = vld [vmem:[%s0 + $0x308] sm:$0xff]
    %v177 = vld [vmem:[%s0 + $0x310] sm:$0xff]
    %v178 = vld [vmem:[%s0 + $0x318] sm:$0xff]
    %vm179 = vcmask 588800
    %v181 = vsel %vm179, %v76, 0
    %v184 = vsel %vm179, %v78, 0
    %186 = vmatpush.msra.mxu0 %v139
    %187 = vmatpush.msra.mxu0 %v135
    %188 = vmatpush.msra.mxu0 %v131
    %189 = vmatpush.msra.mxu0 %v127
    %190 = vmatpush.msra.mxu0 %v123
    %191 = vmatpush.msra.mxu0 %v119
    %192 = vmatpush.msra.mxu0 %v115
    %193 = vmatpush.msra.mxu0 %v111
    %194 = vmatpush.msra.mxu0 %v107
    %195 = vmatpush.msra.mxu0 %v103
    %196 = vmatpush.msra.mxu0 %v99
    %197 = vmatpush.msra.mxu0 %v95
    %198 = vmatpush.msra.mxu0 %v91
    %199 = vmatpush.msra.mxu0 %v87
    %200 = vmatpush.msra.mxu0 %v83
    %201 = vmatpush.msra.mxu0 %v79
    %202 = vmatmul.f32.gmra.mxu0 %v75
    %v203 = vpop.f32.mrf.mxu0
    %v204 = vadd.f32 0.0, %v203
    %205 = vmatmul.f32.gmra.mxu0 %v77
    %v206 = vpop.f32.mrf.mxu0
    %v207 = vadd.f32 0.0, %v206
    %208 = vdwg.mxu0
    %209 = vmatpush.msra.mxu0 0.0
    %210 = vmatpush.msra.mxu0 0.0
    %211 = vmatpush.msra.mxu0 0.0
    %212 = vmatpush.msra.mxu0 0.0
    %213 = vmatpush.msra.mxu0 0.0
    %214 = vmatpush.msra.mxu0 0.0
    %215 = vmatpush.msra.mxu0 0.0
    %216 = vmatpush.msra.mxu0 %v175
    %217 = vmatpush.msra.mxu0 %v171
    %218 = vmatpush.msra.mxu0 %v167
    %219 = vmatpush.msra.mxu0 %v163
    %220 = vmatpush.msra.mxu0 %v159
    %221 = vmatpush.msra.mxu0 %v155
    %222 = vmatpush.msra.mxu0 %v151
    %223 = vmatpush.msra.mxu0 %v147
    %224 = vmatpush.msra.mxu0 %v143
    %225 = vmatmul.f32.gmra.mxu0 %v181
    %v226 = vpop.f32.mrf.mxu0
    %v227 = vadd.f32 %v204, %v226
    %228 = vmatmul.f32.gmra.mxu0 %v184
    %v229 = vpop.f32.mrf.mxu0
    %v230 = vadd.f32 %v207, %v229
    %231 = vdwg.mxu0
    %232 = vmatpush.msra.mxu0 %v140
    %233 = vmatpush.msra.mxu0 %v136
    %234 = vmatpush.msra.mxu0 %v132
    %235 = vmatpush.msra.mxu0 %v128
    %236 = vmatpush.msra.mxu0 %v124
    %237 = vmatpush.msra.mxu0 %v120
    %238 = vmatpush.msra.mxu0 %v116
    %239 = vmatpush.msra.mxu0 %v112
    %240 = vmatpush.msra.mxu0 %v108
    %241 = vmatpush.msra.mxu0 %v104
    %242 = vmatpush.msra.mxu0 %v100
    %243 = vmatpush.msra.mxu0 %v96
    %244 = vmatpush.msra.mxu0 %v92
    %245 = vmatpush.msra.mxu0 %v88
    %246 = vmatpush.msra.mxu0 %v84
    %247 = vmatpush.msra.mxu0 %v80
    %248 = vmatmul.f32.gmra.mxu0 %v75
    %v249 = vpop.f32.mrf.mxu0
    %v250 = vadd.f32 0.0, %v249
    %251 = vmatmul.f32.gmra.mxu0 %v77
    %v252 = vpop.f32.mrf.mxu0
    %v253 = vadd.f32 0.0, %v252
    %254 = vdwg.mxu0
    %255 = vmatpush.msra.mxu0 0.0
    %256 = vmatpush.msra.mxu0 0.0
    %257 = vmatpush.msra.mxu0 0.0
    %258 = vmatpush.msra.mxu0 0.0
    %259 = vmatpush.msra.mxu0 0.0
    %260 = vmatpush.msra.mxu0 0.0
    %261 = vmatpush.msra.mxu0 0.0
    %262 = vmatpush.msra.mxu0 %v176
    %263 = vmatpush.msra.mxu0 %v172
    %264 = vmatpush.msra.mxu0 %v168
    %265 = vmatpush.msra.mxu0 %v164
    %266 = vmatpush.msra.mxu0 %v160
    %267 = vmatpush.msra.mxu0 %v156
    %268 = vmatpush.msra.mxu0 %v152
    %269 = vmatpush.msra.mxu0 %v148
    %270 = vmatpush.msra.mxu0 %v144
    %271 = vmatmul.f32.gmra.mxu0 %v181
    %v272 = vpop.f32.mrf.mxu0
    %v273 = vadd.f32 %v250, %v272
    %274 = vmatmul.f32.gmra.mxu0 %v184
    %v275 = vpop.f32.mrf.mxu0
    %v276 = vadd.f32 %v253, %v275
    %277 = vdwg.mxu0
    %278 = vmatpush.msra.mxu0 %v141
    %279 = vmatpush.msra.mxu0 %v137
    %280 = vmatpush.msra.mxu0 %v133
    %281 = vmatpush.msra.mxu0 %v129
    %282 = vmatpush.msra.mxu0 %v125
    %283 = vmatpush.msra.mxu0 %v121
    %284 = vmatpush.msra.mxu0 %v117
    %285 = vmatpush.msra.mxu0 %v113
    %286 = vmatpush.msra.mxu0 %v109
    %287 = vmatpush.msra.mxu0 %v105
    %288 = vmatpush.msra.mxu0 %v101
    %289 = vmatpush.msra.mxu0 %v97
    %290 = vmatpush.msra.mxu0 %v93
    %291 = vmatpush.msra.mxu0 %v89
    %292 = vmatpush.msra.mxu0 %v85
    %293 = vmatpush.msra.mxu0 %v81
    %294 = vmatmul.f32.gmra.mxu0 %v75
    %v295 = vpop.f32.mrf.mxu0
    %v296 = vadd.f32 0.0, %v295
    %297 = vmatmul.f32.gmra.mxu0 %v77
    %v298 = vpop.f32.mrf.mxu0
    %v299 = vadd.f32 0.0, %v298
    %300 = vdwg.mxu0
    %301 = vmatpush.msra.mxu0 0.0
    %302 = vmatpush.msra.mxu0 0.0
    %303 = vmatpush.msra.mxu0 0.0
    %304 = vmatpush.msra.mxu0 0.0
    %305 = vmatpush.msra.mxu0 0.0
    %306 = vmatpush.msra.mxu0 0.0
    %307 = vmatpush.msra.mxu0 0.0
    %308 = vmatpush.msra.mxu0 %v177
    %309 = vmatpush.msra.mxu0 %v173
    %310 = vmatpush.msra.mxu0 %v169
    %311 = vmatpush.msra.mxu0 %v165
    %312 = vmatpush.msra.mxu0 %v161
    %313 = vmatpush.msra.mxu0 %v157
    %314 = vmatpush.msra.mxu0 %v153
    %315 = vmatpush.msra.mxu0 %v149
    %316 = vmatpush.msra.mxu0 %v145
    %317 = vmatmul.f32.gmra.mxu0 %v181
    %v318 = vpop.f32.mrf.mxu0
    %v319 = vadd.f32 %v296, %v318
    %320 = vmatmul.f32.gmra.mxu0 %v184
    %v321 = vpop.f32.mrf.mxu0
    %v322 = vadd.f32 %v299, %v321
    %323 = vdwg.mxu0
    %324 = vmatpush.msra.mxu0 %v142
    %325 = vmatpush.msra.mxu0 %v138
    %326 = vmatpush.msra.mxu0 %v134
    %327 = vmatpush.msra.mxu0 %v130
    %328 = vmatpush.msra.mxu0 %v126
    %329 = vmatpush.msra.mxu0 %v122
    %330 = vmatpush.msra.mxu0 %v118
    %331 = vmatpush.msra.mxu0 %v114
    %332 = vmatpush.msra.mxu0 %v110
    %333 = vmatpush.msra.mxu0 %v106
    %334 = vmatpush.msra.mxu0 %v102
    %335 = vmatpush.msra.mxu0 %v98
    %336 = vmatpush.msra.mxu0 %v94
    %337 = vmatpush.msra.mxu0 %v90
    %338 = vmatpush.msra.mxu0 %v86
    %339 = vmatpush.msra.mxu0 %v82
    %340 = vmatmul.f32.gmra.mxu0 %v75
    %v341 = vpop.f32.mrf.mxu0
    %v342 = vadd.f32 0.0, %v341
    %343 = vmatmul.f32.gmra.mxu0 %v77
    %v344 = vpop.f32.mrf.mxu0
    %v345 = vadd.f32 0.0, %v344
    %346 = vdwg.mxu0
    %347 = vmatpush.msra.mxu0 0.0
    %348 = vmatpush.msra.mxu0 0.0
    %349 = vmatpush.msra.mxu0 0.0
    %350 = vmatpush.msra.mxu0 0.0
    %351 = vmatpush.msra.mxu0 0.0
    %352 = vmatpush.msra.mxu0 0.0
    %353 = vmatpush.msra.mxu0 0.0
    %354 = vmatpush.msra.mxu0 %v178
    %355 = vmatpush.msra.mxu0 %v174
    %356 = vmatpush.msra.mxu0 %v170
    %357 = vmatpush.msra.mxu0 %v166
    %358 = vmatpush.msra.mxu0 %v162
    %359 = vmatpush.msra.mxu0 %v158
    %360 = vmatpush.msra.mxu0 %v154
    %361 = vmatpush.msra.mxu0 %v150
    %362 = vmatpush.msra.mxu0 %v146
    %363 = vmatmul.f32.gmra.mxu0 %v181
    %v364 = vpop.f32.mrf.mxu0
    %v365 = vadd.f32 %v342, %v364
    %366 = vmatmul.f32.gmra.mxu0 %v184
    %v367 = vpop.f32.mrf.mxu0
    %v368 = vadd.f32 %v345, %v367
    %369 = vdwg.mxu0
    %v370 = vadd.f32 %v227, 0.0
    %v371 = vadd.f32 %v273, 0.0
    %v372 = vadd.f32 %v319, 0.0
    %v377 = vrot.slane %v227, 1
    %v378 = vrot.slane %v273, 1
    %v379 = vrot.slane %v319, 1
    %v380 = vrot.slane %v365, 1
    %381 = vrot.lane.b32.xlu0 %v377, 127
    %v382 = vpop.permute.xlu0 %381
    %383 = vrot.lane.b32.xlu0 %v378, 127
    %v384 = vpop.permute.xlu0 %383
    %385 = vrot.lane.b32.xlu0 %v379, 127
    %v386 = vpop.permute.xlu0 %385
    %387 = vrot.lane.b32.xlu0 %v380, 127
    %v388 = vpop.permute.xlu0 %387
    %vm389 = vcmask 1039360
    %v390 = vsel %vm389, %v382, %v384
    %v391 = vsel %vm389, %v384, %v386
    %v392 = vsel %vm389, %v386, %v388
    %v396 = vadd.f32 %v370, %v390
    %v397 = vadd.f32 %v371, %v391
    %v398 = vadd.f32 %v372, %v392
    %v399 = vrot.slane %v227, 2
    %v400 = vrot.slane %v273, 2
    %v401 = vrot.slane %v319, 2
    %v402 = vrot.slane %v365, 2
    %403 = vrot.lane.b32.xlu0 %v399, 126
    %v404 = vpop.permute.xlu0 %403
    %405 = vrot.lane.b32.xlu0 %v400, 126
    %v406 = vpop.permute.xlu0 %405
    %407 = vrot.lane.b32.xlu0 %v401, 126
    %v408 = vpop.permute.xlu0 %407
    %409 = vrot.lane.b32.xlu0 %v402, 126
    %v410 = vpop.permute.xlu0 %409
    %vm411 = vcmask 1031168
    %v412 = vsel %vm411, %v404, %v406
    %v413 = vsel %vm411, %v406, %v408
    %v414 = vsel %vm411, %v408, %v410
    %v418 = vadd.f32 %v396, %v412
    %v419 = vadd.f32 %v397, %v413
    %v420 = vadd.f32 %v398, %v414
    %v421 = vrot.slane %v227, 3
    %v422 = vrot.slane %v273, 3
    %v423 = vrot.slane %v319, 3
    %v424 = vrot.slane %v365, 3
    %425 = vrot.lane.b32.xlu0 %v421, 106
    %v426 = vpop.permute.xlu0 %425
    %427 = vrot.lane.b32.xlu0 %v422, 106
    %v428 = vpop.permute.xlu0 %427
    %429 = vrot.lane.b32.xlu0 %v423, 106
    %v430 = vpop.permute.xlu0 %429
    %431 = vrot.lane.b32.xlu0 %v424, 106
    %v432 = vpop.permute.xlu0 %431
    %vm433 = vcmask 867328
    %v434 = vsel %vm433, %v426, %v428
    %v435 = vsel %vm433, %v428, %v430
    %v436 = vsel %vm433, %v430, %v432
    %v440 = vadd.f32 %v418, %v434
    %v441 = vadd.f32 %v419, %v435
    %v442 = vadd.f32 %v420, %v436
    %v443 = vrot.slane %v227, 4
    %v444 = vrot.slane %v273, 4
    %v445 = vrot.slane %v319, 4
    %v446 = vrot.slane %v365, 4
    %447 = vrot.lane.b32.xlu0 %v443, 105
    %v448 = vpop.permute.xlu0 %447
    %449 = vrot.lane.b32.xlu0 %v444, 105
    %v450 = vpop.permute.xlu0 %449
    %451 = vrot.lane.b32.xlu0 %v445, 105
    %v452 = vpop.permute.xlu0 %451
    %453 = vrot.lane.b32.xlu0 %v446, 105
    %v454 = vpop.permute.xlu0 %453
    %vm455 = vcmask 859136
    %v456 = vsel %vm455, %v448, %v450
    %v457 = vsel %vm455, %v450, %v452
    %v458 = vsel %vm455, %v452, %v454
    %v462 = vadd.f32 %v440, %v456
    %v463 = vadd.f32 %v441, %v457
    %v464 = vadd.f32 %v442, %v458
    %v465 = vrot.slane %v227, 5
    %v466 = vrot.slane %v273, 5
    %v467 = vrot.slane %v319, 5
    %v468 = vrot.slane %v365, 5
    %469 = vrot.lane.b32.xlu0 %v465, 104
    %v470 = vpop.permute.xlu0 %469
    %471 = vrot.lane.b32.xlu0 %v466, 104
    %v472 = vpop.permute.xlu0 %471
    %473 = vrot.lane.b32.xlu0 %v467, 104
    %v474 = vpop.permute.xlu0 %473
    %475 = vrot.lane.b32.xlu0 %v468, 104
    %v476 = vpop.permute.xlu0 %475
    %vm477 = vcmask 850944
    %v478 = vsel %vm477, %v470, %v472
    %v479 = vsel %vm477, %v472, %v474
    %v480 = vsel %vm477, %v474, %v476
    %v484 = vadd.f32 %v462, %v478
    %v485 = vadd.f32 %v463, %v479
    %v486 = vadd.f32 %v464, %v480
    %v487 = vrot.slane %v227, 6
    %v488 = vrot.slane %v273, 6
    %v489 = vrot.slane %v319, 6
    %v490 = vrot.slane %v365, 6
    %491 = vrot.lane.b32.xlu0 %v487, 84
    %v492 = vpop.permute.xlu0 %491
    %493 = vrot.lane.b32.xlu0 %v488, 84
    %v494 = vpop.permute.xlu0 %493
    %495 = vrot.lane.b32.xlu0 %v489, 84
    %v496 = vpop.permute.xlu0 %495
    %497 = vrot.lane.b32.xlu0 %v490, 84
    %v498 = vpop.permute.xlu0 %497
    %vm499 = vcmask 687104
    %v500 = vsel %vm499, %v492, %v494
    %v501 = vsel %vm499, %v494, %v496
    %v502 = vsel %vm499, %v496, %v498
    %v506 = vadd.f32 %v484, %v500
    %v507 = vadd.f32 %v485, %v501
    %v508 = vadd.f32 %v486, %v502
    %v509 = vrot.slane %v227, 7
    %v510 = vrot.slane %v273, 7
    %v511 = vrot.slane %v319, 7
    %v512 = vrot.slane %v365, 7
    %513 = vrot.lane.b32.xlu0 %v509, 83
    %v514 = vpop.permute.xlu0 %513
    %515 = vrot.lane.b32.xlu0 %v510, 83
    %v516 = vpop.permute.xlu0 %515
    %517 = vrot.lane.b32.xlu0 %v511, 83
    %v518 = vpop.permute.xlu0 %517
    %519 = vrot.lane.b32.xlu0 %v512, 83
    %v520 = vpop.permute.xlu0 %519
    %vm521 = vcmask 678912
    %v522 = vsel %vm521, %v514, %v516
    %v523 = vsel %vm521, %v516, %v518
    %v524 = vsel %vm521, %v518, %v520
    %v528 = vadd.f32 %v506, %v522
    %v529 = vadd.f32 %v507, %v523
    %v530 = vadd.f32 %v508, %v524
    %535 = vrot.lane.b32.xlu0 %v230, 82
    %v536 = vpop.permute.xlu0 %535
    %537 = vrot.lane.b32.xlu0 %v276, 82
    %v538 = vpop.permute.xlu0 %537
    %539 = vrot.lane.b32.xlu0 %v322, 82
    %v540 = vpop.permute.xlu0 %539
    %541 = vrot.lane.b32.xlu0 %v368, 82
    %v542 = vpop.permute.xlu0 %541
    %vm543 = vcmask 670720
    %v544 = vsel %vm543, %v536, %v538
    %v545 = vsel %vm543, %v538, %v540
    %v546 = vsel %vm543, %v540, %v542
    %v550 = vadd.f32 %v528, %v544
    %v551 = vadd.f32 %v529, %v545
    %v552 = vadd.f32 %v530, %v546
    %s553 = scalar_lea.vmem %s0, 800
    %v554 = vld [vmem:[%s553] sm:$0xff]
    %v555 = vld [vmem:[%s553 + $0x8] sm:$0xff]
    %v556 = vld [vmem:[%s553 + $0x10] sm:$0xff]
    %v557 = vld [vmem:[%s553 + $0x18] sm:$0xff]
    %v558 = vld [vmem:[%s553 + $0x20] sm:$0xff]
    %v559 = vld [vmem:[%s553 + $0x28] sm:$0xff]
    %v560 = vld [vmem:[%s553 + $0x30] sm:$0xff]
    %v561 = vld [vmem:[%s553 + $0x38] sm:$0xff]
    %v562 = vld [vmem:[%s553 + $0x40] sm:$0xff]
    %v563 = vld [vmem:[%s553 + $0x48] sm:$0xff]
    %v564 = vld [vmem:[%s553 + $0x50] sm:$0xff]
    %v565 = vld [vmem:[%s553 + $0x58] sm:$0xff]
    %v566 = vld [vmem:[%s553 + $0x60] sm:$0xff]
    %v567 = vld [vmem:[%s553 + $0x68] sm:$0xff]
    %v568 = vld [vmem:[%s553 + $0x70] sm:$0xff]
    %v569 = vld [vmem:[%s553 + $0x78] sm:$0xff]
    %v570 = vld [vmem:[%s553 + $0x80] sm:$0xff]
    %v571 = vld [vmem:[%s553 + $0x88] sm:$0xff]
    %v572 = vld [vmem:[%s553 + $0x90] sm:$0xff]
    %v573 = vld [vmem:[%s553 + $0x98] sm:$0xff]
    %v574 = vld [vmem:[%s553 + $0xa0] sm:$0xff]
    %v575 = vld [vmem:[%s553 + $0xa8] sm:$0xff]
    %v576 = vld [vmem:[%s553 + $0xb0] sm:$0xff]
    %v577 = vld [vmem:[%s553 + $0xb8] sm:$0xff]
    %v578 = vld [vmem:[%s553 + $0xc0] sm:$0xff]
    %v579 = vld [vmem:[%s553 + $0xc8] sm:$0xff]
    %v580 = vld [vmem:[%s553 + $0xd0] sm:$0xff]
    %v581 = vld [vmem:[%s553 + $0xd8] sm:$0xff]
    %v582 = vld [vmem:[%s553 + $0xe0] sm:$0xff]
    %v583 = vld [vmem:[%s553 + $0xe8] sm:$0xff]
    %v584 = vld [vmem:[%s553 + $0xf0] sm:$0xff]
    %v585 = vld [vmem:[%s553 + $0xf8] sm:$0xff]
    %v586 = vld [vmem:[%s553 + $0x100] sm:$0xff]
    %v587 = vld [vmem:[%s553 + $0x108] sm:$0xff]
    %v588 = vld [vmem:[%s553 + $0x110] sm:$0xff]
    %v589 = vld [vmem:[%s553 + $0x118] sm:$0xff]
    %v590 = vld [vmem:[%s553 + $0x120] sm:$0xff]
    %v591 = vld [vmem:[%s553 + $0x128] sm:$0xff]
    %v592 = vld [vmem:[%s553 + $0x130] sm:$0xff]
    %v593 = vld [vmem:[%s553 + $0x138] sm:$0xff]
    %v594 = vld [vmem:[%s553 + $0x140] sm:$0xff]
    %v595 = vld [vmem:[%s553 + $0x148] sm:$0xff]
    %v596 = vld [vmem:[%s553 + $0x150] sm:$0xff]
    %v597 = vld [vmem:[%s553 + $0x158] sm:$0xff]
    %v598 = vld [vmem:[%s553 + $0x160] sm:$0xff]
    %v599 = vld [vmem:[%s553 + $0x168] sm:$0xff]
    %v600 = vld [vmem:[%s553 + $0x170] sm:$0xff]
    %v601 = vld [vmem:[%s553 + $0x178] sm:$0xff]
    %v602 = vld [vmem:[%s553 + $0x180] sm:$0xff]
    %v603 = vld [vmem:[%s553 + $0x188] sm:$0xff]
    %v604 = vld [vmem:[%s553 + $0x190] sm:$0xff]
    %v605 = vld [vmem:[%s553 + $0x198] sm:$0xff]
    %v606 = vld [vmem:[%s553 + $0x1a0] sm:$0xff]
    %v607 = vld [vmem:[%s553 + $0x1a8] sm:$0xff]
    %v608 = vld [vmem:[%s553 + $0x1b0] sm:$0xff]
    %v609 = vld [vmem:[%s553 + $0x1b8] sm:$0xff]
    %v610 = vld [vmem:[%s553 + $0x1c0] sm:$0xff]
    %v611 = vld [vmem:[%s553 + $0x1c8] sm:$0xff]
    %v612 = vld [vmem:[%s553 + $0x1d0] sm:$0xff]
    %v613 = vld [vmem:[%s553 + $0x1d8] sm:$0xff]
    %v614 = vld [vmem:[%s553 + $0x1e0] sm:$0xff]
    %v615 = vld [vmem:[%s553 + $0x1e8] sm:$0xff]
    %v616 = vld [vmem:[%s553 + $0x1f0] sm:$0xff]
    %v617 = vld [vmem:[%s553 + $0x1f8] sm:$0xff]
    %v618 = vld [vmem:[%s553 + $0x200] sm:$0xff]
    %v619 = vld [vmem:[%s553 + $0x208] sm:$0xff]
    %v620 = vld [vmem:[%s553 + $0x210] sm:$0xff]
    %v621 = vld [vmem:[%s553 + $0x218] sm:$0xff]
    %v622 = vld [vmem:[%s553 + $0x220] sm:$0xff]
    %v623 = vld [vmem:[%s553 + $0x228] sm:$0xff]
    %v624 = vld [vmem:[%s553 + $0x230] sm:$0xff]
    %v625 = vld [vmem:[%s553 + $0x238] sm:$0xff]
    %v626 = vld [vmem:[%s553 + $0x240] sm:$0xff]
    %v627 = vld [vmem:[%s553 + $0x248] sm:$0xff]
    %v628 = vld [vmem:[%s553 + $0x250] sm:$0xff]
    %v629 = vld [vmem:[%s553 + $0x258] sm:$0xff]
    %v630 = vld [vmem:[%s553 + $0x260] sm:$0xff]
    %v631 = vld [vmem:[%s553 + $0x268] sm:$0xff]
    %v632 = vld [vmem:[%s553 + $0x270] sm:$0xff]
    %v633 = vld [vmem:[%s553 + $0x278] sm:$0xff]
    %v634 = vld [vmem:[%s553 + $0x280] sm:$0xff]
    %v635 = vld [vmem:[%s553 + $0x288] sm:$0xff]
    %v636 = vld [vmem:[%s553 + $0x290] sm:$0xff]
    %v637 = vld [vmem:[%s553 + $0x298] sm:$0xff]
    %v638 = vld [vmem:[%s553 + $0x2a0] sm:$0xff]
    %v639 = vld [vmem:[%s553 + $0x2a8] sm:$0xff]
    %v640 = vld [vmem:[%s553 + $0x2b0] sm:$0xff]
    %v641 = vld [vmem:[%s553 + $0x2b8] sm:$0xff]
    %v642 = vld [vmem:[%s553 + $0x2c0] sm:$0xff]
    %v643 = vld [vmem:[%s553 + $0x2c8] sm:$0xff]
    %v644 = vld [vmem:[%s553 + $0x2d0] sm:$0xff]
    %v645 = vld [vmem:[%s553 + $0x2d8] sm:$0xff]
    %v646 = vld [vmem:[%s553 + $0x2e0] sm:$0xff]
    %v647 = vld [vmem:[%s553 + $0x2e8] sm:$0xff]
    %v648 = vld [vmem:[%s553 + $0x2f0] sm:$0xff]
    %v649 = vld [vmem:[%s553 + $0x2f8] sm:$0xff]
    %v650 = vld [vmem:[%s553 + $0x300] sm:$0xff]
    %v651 = vld [vmem:[%s553 + $0x308] sm:$0xff]
    %v652 = vld [vmem:[%s553 + $0x310] sm:$0xff]
    %v653 = vld [vmem:[%s553 + $0x318] sm:$0xff]
    %654 = vmatpush.msra.mxu0 %v614
    %655 = vmatpush.msra.mxu0 %v610
    %656 = vmatpush.msra.mxu0 %v606
    %657 = vmatpush.msra.mxu0 %v602
    %658 = vmatpush.msra.mxu0 %v598
    %659 = vmatpush.msra.mxu0 %v594
    %660 = vmatpush.msra.mxu0 %v590
    %661 = vmatpush.msra.mxu0 %v586
    %662 = vmatpush.msra.mxu0 %v582
    %663 = vmatpush.msra.mxu0 %v578
    %664 = vmatpush.msra.mxu0 %v574
    %665 = vmatpush.msra.mxu0 %v570
    %666 = vmatpush.msra.mxu0 %v566
    %667 = vmatpush.msra.mxu0 %v562
    %668 = vmatpush.msra.mxu0 %v558
    %669 = vmatpush.msra.mxu0 %v554
    %670 = vmatmul.f32.gmra.mxu0 %v75
    %v671 = vpop.f32.mrf.mxu0
    %v672 = vadd.f32 0.0, %v671
    %673 = vmatmul.f32.gmra.mxu0 %v77
    %v674 = vpop.f32.mrf.mxu0
    %v675 = vadd.f32 0.0, %v674
    %676 = vdwg.mxu0
    %677 = vmatpush.msra.mxu0 0.0
    %678 = vmatpush.msra.mxu0 0.0
    %679 = vmatpush.msra.mxu0 0.0
    %680 = vmatpush.msra.mxu0 0.0
    %681 = vmatpush.msra.mxu0 0.0
    %682 = vmatpush.msra.mxu0 0.0
    %683 = vmatpush.msra.mxu0 0.0
    %684 = vmatpush.msra.mxu0 %v650
    %685 = vmatpush.msra.mxu0 %v646
    %686 = vmatpush.msra.mxu0 %v642
    %687 = vmatpush.msra.mxu0 %v638
    %688 = vmatpush.msra.mxu0 %v634
    %689 = vmatpush.msra.mxu0 %v630
    %690 = vmatpush.msra.mxu0 %v626
    %691 = vmatpush.msra.mxu0 %v622
    %692 = vmatpush.msra.mxu0 %v618
    %693 = vmatmul.f32.gmra.mxu0 %v181
    %v694 = vpop.f32.mrf.mxu0
    %v695 = vadd.f32 %v672, %v694
    %696 = vmatmul.f32.gmra.mxu0 %v184
    %v697 = vpop.f32.mrf.mxu0
    %v698 = vadd.f32 %v675, %v697
    %699 = vdwg.mxu0
    %700 = vmatpush.msra.mxu0 %v615
    %701 = vmatpush.msra.mxu0 %v611
    %702 = vmatpush.msra.mxu0 %v607
    %703 = vmatpush.msra.mxu0 %v603
    %704 = vmatpush.msra.mxu0 %v599
    %705 = vmatpush.msra.mxu0 %v595
    %706 = vmatpush.msra.mxu0 %v591
    %707 = vmatpush.msra.mxu0 %v587
    %708 = vmatpush.msra.mxu0 %v583
    %709 = vmatpush.msra.mxu0 %v579
    %710 = vmatpush.msra.mxu0 %v575
    %711 = vmatpush.msra.mxu0 %v571
    %712 = vmatpush.msra.mxu0 %v567
    %713 = vmatpush.msra.mxu0 %v563
    %714 = vmatpush.msra.mxu0 %v559
    %715 = vmatpush.msra.mxu0 %v555
    %716 = vmatmul.f32.gmra.mxu0 %v75
    %v717 = vpop.f32.mrf.mxu0
    %v718 = vadd.f32 0.0, %v717
    %719 = vmatmul.f32.gmra.mxu0 %v77
    %v720 = vpop.f32.mrf.mxu0
    %v721 = vadd.f32 0.0, %v720
    %722 = vdwg.mxu0
    %723 = vmatpush.msra.mxu0 0.0
    %724 = vmatpush.msra.mxu0 0.0
    %725 = vmatpush.msra.mxu0 0.0
    %726 = vmatpush.msra.mxu0 0.0
    %727 = vmatpush.msra.mxu0 0.0
    %728 = vmatpush.msra.mxu0 0.0
    %729 = vmatpush.msra.mxu0 0.0
    %730 = vmatpush.msra.mxu0 %v651
    %731 = vmatpush.msra.mxu0 %v647
    %732 = vmatpush.msra.mxu0 %v643
    %733 = vmatpush.msra.mxu0 %v639
    %734 = vmatpush.msra.mxu0 %v635
    %735 = vmatpush.msra.mxu0 %v631
    %736 = vmatpush.msra.mxu0 %v627
    %737 = vmatpush.msra.mxu0 %v623
    %738 = vmatpush.msra.mxu0 %v619
    %739 = vmatmul.f32.gmra.mxu0 %v181
    %v740 = vpop.f32.mrf.mxu0
    %v741 = vadd.f32 %v718, %v740
    %742 = vmatmul.f32.gmra.mxu0 %v184
    %v743 = vpop.f32.mrf.mxu0
    %v744 = vadd.f32 %v721, %v743
    %745 = vdwg.mxu0
    %746 = vmatpush.msra.mxu0 %v616
    %747 = vmatpush.msra.mxu0 %v612
    %748 = vmatpush.msra.mxu0 %v608
    %749 = vmatpush.msra.mxu0 %v604
    %750 = vmatpush.msra.mxu0 %v600
    %751 = vmatpush.msra.mxu0 %v596
    %752 = vmatpush.msra.mxu0 %v592
    %753 = vmatpush.msra.mxu0 %v588
    %754 = vmatpush.msra.mxu0 %v584
    %755 = vmatpush.msra.mxu0 %v580
    %756 = vmatpush.msra.mxu0 %v576
    %757 = vmatpush.msra.mxu0 %v572
    %758 = vmatpush.msra.mxu0 %v568
    %759 = vmatpush.msra.mxu0 %v564
    %760 = vmatpush.msra.mxu0 %v560
    %761 = vmatpush.msra.mxu0 %v556
    %762 = vmatmul.f32.gmra.mxu0 %v75
    %v763 = vpop.f32.mrf.mxu0
    %v764 = vadd.f32 0.0, %v763
    %765 = vmatmul.f32.gmra.mxu0 %v77
    %v766 = vpop.f32.mrf.mxu0
    %v767 = vadd.f32 0.0, %v766
    %768 = vdwg.mxu0
    %769 = vmatpush.msra.mxu0 0.0
    %770 = vmatpush.msra.mxu0 0.0
    %771 = vmatpush.msra.mxu0 0.0
    %772 = vmatpush.msra.mxu0 0.0
    %773 = vmatpush.msra.mxu0 0.0
    %774 = vmatpush.msra.mxu0 0.0
    %775 = vmatpush.msra.mxu0 0.0
    %776 = vmatpush.msra.mxu0 %v652
    %777 = vmatpush.msra.mxu0 %v648
    %778 = vmatpush.msra.mxu0 %v644
    %779 = vmatpush.msra.mxu0 %v640
    %780 = vmatpush.msra.mxu0 %v636
    %781 = vmatpush.msra.mxu0 %v632
    %782 = vmatpush.msra.mxu0 %v628
    %783 = vmatpush.msra.mxu0 %v624
    %784 = vmatpush.msra.mxu0 %v620
    %785 = vmatmul.f32.gmra.mxu0 %v181
    %v786 = vpop.f32.mrf.mxu0
    %v787 = vadd.f32 %v764, %v786
    %788 = vmatmul.f32.gmra.mxu0 %v184
    %v789 = vpop.f32.mrf.mxu0
    %v790 = vadd.f32 %v767, %v789
    %791 = vdwg.mxu0
    %792 = vmatpush.msra.mxu0 %v617
    %793 = vmatpush.msra.mxu0 %v613
    %794 = vmatpush.msra.mxu0 %v609
    %795 = vmatpush.msra.mxu0 %v605
    %796 = vmatpush.msra.mxu0 %v601
    %797 = vmatpush.msra.mxu0 %v597
    %798 = vmatpush.msra.mxu0 %v593
    %799 = vmatpush.msra.mxu0 %v589
    %800 = vmatpush.msra.mxu0 %v585
    %801 = vmatpush.msra.mxu0 %v581
    %802 = vmatpush.msra.mxu0 %v577
    %803 = vmatpush.msra.mxu0 %v573
    %804 = vmatpush.msra.mxu0 %v569
    %805 = vmatpush.msra.mxu0 %v565
    %806 = vmatpush.msra.mxu0 %v561
    %807 = vmatpush.msra.mxu0 %v557
    %808 = vmatmul.f32.gmra.mxu0 %v75
    %v809 = vpop.f32.mrf.mxu0
    %v810 = vadd.f32 0.0, %v809
    %811 = vmatmul.f32.gmra.mxu0 %v77
    %v812 = vpop.f32.mrf.mxu0
    %v813 = vadd.f32 0.0, %v812
    %814 = vdwg.mxu0
    %815 = vmatpush.msra.mxu0 0.0
    %816 = vmatpush.msra.mxu0 0.0
    %817 = vmatpush.msra.mxu0 0.0
    %818 = vmatpush.msra.mxu0 0.0
    %819 = vmatpush.msra.mxu0 0.0
    %820 = vmatpush.msra.mxu0 0.0
    %821 = vmatpush.msra.mxu0 0.0
    %822 = vmatpush.msra.mxu0 %v653
    %823 = vmatpush.msra.mxu0 %v649
    %824 = vmatpush.msra.mxu0 %v645
    %825 = vmatpush.msra.mxu0 %v641
    %826 = vmatpush.msra.mxu0 %v637
    %827 = vmatpush.msra.mxu0 %v633
    %828 = vmatpush.msra.mxu0 %v629
    %829 = vmatpush.msra.mxu0 %v625
    %830 = vmatpush.msra.mxu0 %v621
    %831 = vmatmul.f32.gmra.mxu0 %v181
    %v832 = vpop.f32.mrf.mxu0
    %v833 = vadd.f32 %v810, %v832
    %834 = vmatmul.f32.gmra.mxu0 %v184
    %v835 = vpop.f32.mrf.mxu0
    %v836 = vadd.f32 %v813, %v835
    %837 = vdwg.mxu0
    %v838 = vadd.f32 %v695, 0.0
    %v839 = vadd.f32 %v741, 0.0
    %v840 = vadd.f32 %v787, 0.0
    %v845 = vrot.slane %v695, 1
    %v846 = vrot.slane %v741, 1
    %v847 = vrot.slane %v787, 1
    %v848 = vrot.slane %v833, 1
    %849 = vrot.lane.b32.xlu0 %v845, 127
    %v850 = vpop.permute.xlu0 %849
    %851 = vrot.lane.b32.xlu0 %v846, 127
    %v852 = vpop.permute.xlu0 %851
    %853 = vrot.lane.b32.xlu0 %v847, 127
    %v854 = vpop.permute.xlu0 %853
    %855 = vrot.lane.b32.xlu0 %v848, 127
    %v856 = vpop.permute.xlu0 %855
    %v857 = vsel %vm389, %v850, %v852
    %v858 = vsel %vm389, %v852, %v854
    %v859 = vsel %vm389, %v854, %v856
    %v863 = vadd.f32 %v838, %v857
    %v864 = vadd.f32 %v839, %v858
    %v865 = vadd.f32 %v840, %v859
    %v866 = vrot.slane %v695, 2
    %v867 = vrot.slane %v741, 2
    %v868 = vrot.slane %v787, 2
    %v869 = vrot.slane %v833, 2
    %870 = vrot.lane.b32.xlu0 %v866, 126
    %v871 = vpop.permute.xlu0 %870
    %872 = vrot.lane.b32.xlu0 %v867, 126
    %v873 = vpop.permute.xlu0 %872
    %874 = vrot.lane.b32.xlu0 %v868, 126
    %v875 = vpop.permute.xlu0 %874
    %876 = vrot.lane.b32.xlu0 %v869, 126
    %v877 = vpop.permute.xlu0 %876
    %v878 = vsel %vm411, %v871, %v873
    %v879 = vsel %vm411, %v873, %v875
    %v880 = vsel %vm411, %v875, %v877
    %v884 = vadd.f32 %v863, %v878
    %v885 = vadd.f32 %v864, %v879
    %v886 = vadd.f32 %v865, %v880
    %v887 = vrot.slane %v695, 3
    %v888 = vrot.slane %v741, 3
    %v889 = vrot.slane %v787, 3
    %v890 = vrot.slane %v833, 3
    %891 = vrot.lane.b32.xlu0 %v887, 106
    %v892 = vpop.permute.xlu0 %891
    %893 = vrot.lane.b32.xlu0 %v888, 106
    %v894 = vpop.permute.xlu0 %893
    %895 = vrot.lane.b32.xlu0 %v889, 106
    %v896 = vpop.permute.xlu0 %895
    %897 = vrot.lane.b32.xlu0 %v890, 106
    %v898 = vpop.permute.xlu0 %897
    %v899 = vsel %vm433, %v892, %v894
    %v900 = vsel %vm433, %v894, %v896
    %v901 = vsel %vm433, %v896, %v898
    %v905 = vadd.f32 %v884, %v899
    %v906 = vadd.f32 %v885, %v900
    %v907 = vadd.f32 %v886, %v901
    %v908 = vrot.slane %v695, 4
    %v909 = vrot.slane %v741, 4
    %v910 = vrot.slane %v787, 4
    %v911 = vrot.slane %v833, 4
    %912 = vrot.lane.b32.xlu0 %v908, 105
    %v913 = vpop.permute.xlu0 %912
    %914 = vrot.lane.b32.xlu0 %v909, 105
    %v915 = vpop.permute.xlu0 %914
    %916 = vrot.lane.b32.xlu0 %v910, 105
    %v917 = vpop.permute.xlu0 %916
    %918 = vrot.lane.b32.xlu0 %v911, 105
    %v919 = vpop.permute.xlu0 %918
    %v920 = vsel %vm455, %v913, %v915
    %v921 = vsel %vm455, %v915, %v917
    %v922 = vsel %vm455, %v917, %v919
    %v926 = vadd.f32 %v905, %v920
    %v927 = vadd.f32 %v906, %v921
    %v928 = vadd.f32 %v907, %v922
    %v929 = vrot.slane %v695, 5
    %v930 = vrot.slane %v741, 5
    %v931 = vrot.slane %v787, 5
    %v932 = vrot.slane %v833, 5
    %933 = vrot.lane.b32.xlu0 %v929, 104
    %v934 = vpop.permute.xlu0 %933
    %935 = vrot.lane.b32.xlu0 %v930, 104
    %v936 = vpop.permute.xlu0 %935
    %937 = vrot.lane.b32.xlu0 %v931, 104
    %v938 = vpop.permute.xlu0 %937
    %939 = vrot.lane.b32.xlu0 %v932, 104
    %v940 = vpop.permute.xlu0 %939
    %v941 = vsel %vm477, %v934, %v936
    %v942 = vsel %vm477, %v936, %v938
    %v943 = vsel %vm477, %v938, %v940
    %v947 = vadd.f32 %v926, %v941
    %v948 = vadd.f32 %v927, %v942
    %v949 = vadd.f32 %v928, %v943
    %v950 = vrot.slane %v695, 6
    %v951 = vrot.slane %v741, 6
    %v952 = vrot.slane %v787, 6
    %v953 = vrot.slane %v833, 6
    %954 = vrot.lane.b32.xlu0 %v950, 84
    %v955 = vpop.permute.xlu0 %954
    %956 = vrot.lane.b32.xlu0 %v951, 84
    %v957 = vpop.permute.xlu0 %956
    %958 = vrot.lane.b32.xlu0 %v952, 84
    %v959 = vpop.permute.xlu0 %958
    %960 = vrot.lane.b32.xlu0 %v953, 84
    %v961 = vpop.permute.xlu0 %960
    %v962 = vsel %vm499, %v955, %v957
    %v963 = vsel %vm499, %v957, %v959
    %v964 = vsel %vm499, %v959, %v961
    %v968 = vadd.f32 %v947, %v962
    %v969 = vadd.f32 %v948, %v963
    %v970 = vadd.f32 %v949, %v964
    %v971 = vrot.slane %v695, 7
    %v972 = vrot.slane %v741, 7
    %v973 = vrot.slane %v787, 7
    %v974 = vrot.slane %v833, 7
    %975 = vrot.lane.b32.xlu0 %v971, 83
    %v976 = vpop.permute.xlu0 %975
    %977 = vrot.lane.b32.xlu0 %v972, 83
    %v978 = vpop.permute.xlu0 %977
    %979 = vrot.lane.b32.xlu0 %v973, 83
    %v980 = vpop.permute.xlu0 %979
    %981 = vrot.lane.b32.xlu0 %v974, 83
    %v982 = vpop.permute.xlu0 %981
    %v983 = vsel %vm521, %v976, %v978
    %v984 = vsel %vm521, %v978, %v980
    %v985 = vsel %vm521, %v980, %v982
    %v989 = vadd.f32 %v968, %v983
    %v990 = vadd.f32 %v969, %v984
    %v991 = vadd.f32 %v970, %v985
    %996 = vrot.lane.b32.xlu0 %v698, 82
    %v997 = vpop.permute.xlu0 %996
    %998 = vrot.lane.b32.xlu0 %v744, 82
    %v999 = vpop.permute.xlu0 %998
    %1000 = vrot.lane.b32.xlu0 %v790, 82
    %v1001 = vpop.permute.xlu0 %1000
    %1002 = vrot.lane.b32.xlu0 %v836, 82
    %v1003 = vpop.permute.xlu0 %1002
    %v1004 = vsel %vm543, %v997, %v999
    %v1005 = vsel %vm543, %v999, %v1001
    %v1006 = vsel %vm543, %v1001, %v1003
    %v1010 = vadd.f32 %v989, %v1004
    %v1011 = vadd.f32 %v990, %v1005
    %v1012 = vadd.f32 %v991, %v1006
    %v1016 = vrot.slane %v1010, 7
    %v1017 = vrot.slane %v1011, 7
    %v1018 = vrot.slane %v1012, 7
    %vm1022 = vcmask 1040384
    %v1023 = vsel %vm1022, %v550, %v1016
    %v1024 = vsel %vm1022, %v551, %v1017
    %v1025 = vsel %vm1022, %v552, %v1018
    %vm1026 = vcmp.gt.f32.partialorder %v1023, 0.0
    %vm1027 = vcmp.gt.f32.partialorder %v1024, 0.0
    %vm1028 = vcmp.gt.f32.partialorder %v1025, 0.0
    %v1029 = vmul.f32 %v1023, -93.0
    %v1030 = vmul.f32 %v1024, -93.0
    %v1031 = vmul.f32 %v1025, -93.0
    %v1032 = vsel %vm1026, %v1023, %v1029
    %v1033 = vsel %vm1027, %v1024, %v1030
    %v1034 = vsel %vm1028, %v1025, %v1031
    %v1038 = vrot.slane %v1033, 6
    %v1039 = vrot.slane %v1034, 4
    %vm1040 = vcmask 1041408
    %v1041 = vsel %vm1040, %v1032, %v1038
    %vm1042 = vcmask 1043456
    %v1043 = vsel %vm1042, %v1041, %v1039
    %1045 = vst [vmem:[%s3] sm:$0x3f] %v1043
    // Predicated region
    $region10: #{model_forward.2} parent=1 // pred_check
      _
    $region11: #{model_forward.2} parent=1 // pred_check_branch
      %1047 = sbr.rel (0) target = $region13
    $region12: #{model_forward.2} parent=1 // pred_region
      _
    $region13: #{model_forward.2} parent=1 // pred_fallthru
      _
    // Predicated region
    $region14: #{model_forward.2} parent=1 // pred_check
      _
    $region15: #{model_forward.2} parent=1 // pred_check_branch
      %1049 = sbr.rel (0) target = $region17
    $region16: #{model_forward.2} parent=1 // pred_region
      _
    $region17: #{model_forward.2} parent=1 // pred_fallthru
      _

</llo_original>
